<compile_context>
chip_gen: v5e
topology: v5e:2x2
jax: 0.10.0
libtpu: 0.0.40
codegen_flags: <defaults>
</compile_context>

<pallas_src>
import functools

import jax
import jax.numpy as jnp
from jax.experimental import pallas as pl
from jax.experimental.pallas import tpu as pltpu


def _round_up(x, m):
    return ((x + m - 1) // m) * m


def _tpu_generation():
    """Best-effort TPU generation detection (7 / 6 / 5 / None)."""
    try:
        kind = jax.devices()[0].device_kind.lower()
    except Exception:
        return None
    for g in (7, 6, 5):
        if "v%d" % g in kind:
            return g
    return None


def _vmem_footprint(tm, tf, dm_p, x_itemsize, w_itemsize):
    """Approximate VMEM bytes for one pipelined grid step (2x = double-buffer)."""
    xb = 2 * tm * dm_p * x_itemsize                 # x row tile
    outb = 2 * tm * dm_p * x_itemsize               # output row tile
    w1b = 2 * dm_p * tf * w_itemsize                # W1 chunk
    w2b = 2 * tf * dm_p * w_itemsize                # W2 chunk
    vecs = 2 * 8 * (tf + 3 * dm_p) * 4              # b1,b2,gamma,beta (sublane-padded)
    acc = tm * dm_p * 4                             # f32 accumulator scratch
    h = tm * tf * (4 + w_itemsize)                  # ReLU intermediate (+ cast copy)
    return xb + outb + w1b + w2b + vecs + acc + h


def _select_config(M, d_model, d_ff, x_itemsize, w_itemsize):
    gen = _tpu_generation()
    if gen == 7:
        budget, tm = 44 << 20, 512      # 64 MiB physical VMEM -> keep headroom
    elif gen == 6:
        budget, tm = 96 << 20, 1024     # 128 MiB VMEM, highest compute:BW ratio
    elif gen == 5:
        budget, tm = 96 << 20, 512
    else:
        budget, tm = 56 << 20, 512      # unknown chip -> conservative

    # Lane alignment: 256 for the 2x256x256 MXUs of v6e/v7x (when it matters),
    # 128 otherwise.
    lane_align = 256 if (gen in (6, 7) and d_model > 128) else 128
    dm_p = _round_up(d_model, lane_align)
    ff_align = 256 if (gen in (6, 7) and d_ff > 128) else 128
    df_full = _round_up(d_ff, ff_align)

    M8 = _round_up(M, 8)
    tm = min(tm, M8)
    if gen == 7 and M8 >= 16:
        # Keep >= 2 row tiles so dimension_semantics=("parallel", ...) can
        # shard the i axis across both TensorCores of a v7x chip.
        tm = min(tm, _round_up(M8 // 2, 8))
    tm = max(_round_up(tm, 8), 8)

    # Start weight-resident (single j step -> W1/W2 fetched once per kernel);
    # shrink tf, then tm, until the footprint fits the VMEM budget.
    tf = df_full
    while tf > ff_align and _vmem_footprint(tm, tf, dm_p, x_itemsize, w_itemsize) > budget:
        tf = max(_round_up(tf // 2, ff_align), ff_align)
    while tm > 8 and _vmem_footprint(tm, tf, dm_p, x_itemsize, w_itemsize) > budget:
        tm = max(_round_up(tm // 2, 8), 8)

    df_p = _round_up(d_ff, tf)
    M_p = _round_up(M, tm)
    return tm, tf, dm_p, df_p, M_p, budget


def _ffnn_kernel(x_ref, w1_ref, b1_ref, w2_ref, b2_ref, g_ref, bta_ref,
                 o_ref, acc_ref, *, inv_d, eps, d_model, dm_p):
    j = pl.program_id(1)

    @pl.when(j == 0)
    def _():
        acc_ref[...] = jnp.zeros_like(acc_ref)

    # ---- first linear (current d_ff chunk) + ReLU.  MXU operands in the
    # weight dtype (native f32, or bf16 when compute_dtype=bf16), f32 accum.
    xs = x_ref[...].astype(w1_ref.dtype)
    h = jnp.dot(xs, w1_ref[...], preferred_element_type=jnp.float32)
    h = jnp.maximum(h + b1_ref[...].astype(jnp.float32), 0.0)

    # ---- second linear: accumulate this d_ff chunk's contribution in f32.
    acc_ref[...] += jnp.dot(h.astype(w2_ref.dtype), w2_ref[...],
                            preferred_element_type=jnp.float32)

    # ---- epilogue on the last d_ff chunk: bias + residual + LayerNorm.
    @pl.when(j == pl.num_programs(1) - 1)
    def _():
        x32 = x_ref[...].astype(jnp.float32)
        z = acc_ref[...] + b2_ref[...].astype(jnp.float32) + x32
        # Padded d_model lanes of z are exactly 0 -> plain-sum mean is exact.
        mean = jnp.sum(z, axis=-1, keepdims=True) * inv_d
        centered = z - mean
        if dm_p != d_model:
            # Mask padded lanes so the two-pass variance stays exact.
            lane = jax.lax.broadcasted_iota(jnp.int32, z.shape, 1)
            centered = jnp.where(lane < d_model, centered, 0.0)
        var = jnp.sum(centered * centered, axis=-1, keepdims=True) * inv_d
        inv = jax.lax.rsqrt(var + eps)
        out = (z - mean) * inv * g_ref[...].astype(jnp.float32) \
            + bta_ref[...].astype(jnp.float32)
        o_ref[...] = out.astype(o_ref.dtype)


def positionwise_ffnn(x, w1, b1, w2, b2, gamma, beta, *,
                      eps=1e-6, compute_dtype=None):
    """x: [B, S, d_model]; w1: [d_model, d_ff]; w2: [d_ff, d_model];
    b1: [1, d_ff]; b2/gamma/beta: [1, d_model]. Returns [B, S, d_model].

    eps must match the PyTorch module's LayerNorm eps (nn.LayerNorm default
    is 1e-5; the OpenNMT-style custom LayerNorm uses 1e-6).
    compute_dtype (e.g. jnp.bfloat16) casts W1/W2 and the MXU operands for
    full-rate MXU + halved weight traffic; None keeps the native dtype.
    """
    B, S, d_model = x.shape
    d_ff = w1.shape[1]
    M = B * S

    w_dtype = jnp.dtype(compute_dtype) if compute_dtype is not None else jnp.dtype(w1.dtype)
    tm, tf, dm_p, df_p, M_p, vmem_budget = _select_config(
        M, d_model, d_ff, jnp.dtype(x.dtype).itemsize, w_dtype.itemsize)

    # --- padded, lane-dense operands ---
    x2 = jnp.pad(x.reshape(M, d_model), ((0, M_p - M), (0, dm_p - d_model)))
    w1_p = jnp.pad(w1.astype(w_dtype), ((0, dm_p - d_model), (0, df_p - d_ff)))
    w2_p = jnp.pad(w2.astype(w_dtype), ((0, df_p - d_ff), (0, dm_p - d_model)))
    b1_p = jnp.pad(b1, ((0, 0), (0, df_p - d_ff)))
    b2_p = jnp.pad(b2, ((0, 0), (0, dm_p - d_model)))
    gamma_p = jnp.pad(gamma, ((0, 0), (0, dm_p - d_model)))
    beta_p = jnp.pad(beta, ((0, 0), (0, dm_p - d_model)))

    grid = (M_p // tm, df_p // tf)
    kernel = functools.partial(_ffnn_kernel, inv_d=1.0 / d_model, eps=eps,
                               d_model=d_model, dm_p=dm_p)

    out = pl.pallas_call(
        kernel,
        out_shape=jax.ShapeDtypeStruct((M_p, dm_p), x.dtype),
        grid_spec=pltpu.PrefetchScalarGridSpec(
            num_scalar_prefetch=0,
            grid=grid,
            in_specs=[
                pl.BlockSpec((tm, dm_p), lambda i, j: (i, 0)),   # x rows (resident over j)
                pl.BlockSpec((dm_p, tf), lambda i, j: (0, j)),   # W1 chunk
                pl.BlockSpec((1, tf),    lambda i, j: (0, j)),   # b1 chunk
                pl.BlockSpec((tf, dm_p), lambda i, j: (j, 0)),   # W2 chunk
                pl.BlockSpec((1, dm_p),  lambda i, j: (0, 0)),   # b2
                pl.BlockSpec((1, dm_p),  lambda i, j: (0, 0)),   # gamma
                pl.BlockSpec((1, dm_p),  lambda i, j: (0, 0)),   # beta
            ],
            out_specs=pl.BlockSpec((tm, dm_p), lambda i, j: (i, 0)),
            scratch_shapes=[pltpu.VMEM((tm, dm_p), jnp.float32)],
        ),
        compiler_params=pltpu.CompilerParams(
            dimension_semantics=("parallel", "arbitrary"),
            vmem_limit_bytes=int(vmem_budget)),
    )(x2, w1_p, b1_p, w2_p, b2_p, gamma_p, beta_p)

    return out[:M, :d_model].reshape(B, S, d_model)


def _reference(x, w1, b1, w2, b2, gamma, beta, eps=1e-6):
    h = jnp.maximum(x @ w1 + b1[0], 0.0)
    y = h @ w2 + b2[0]
    z = y + x
    mean = jnp.mean(z, -1, keepdims=True)
    var = jnp.mean((z - mean) ** 2, -1, keepdims=True)
    return (z - mean) * jax.lax.rsqrt(var + eps) * gamma[0] + beta[0]


if __name__ == "__main__":
    key = jax.random.PRNGKey(0)
    B, S, d_model, d_ff = 2, 8, 32, 64

    kx, k1, k2, k3, k4 = jax.random.split(key, 5)
    x = jax.random.normal(kx, (B, S, d_model), dtype=jnp.float32)

    # Deterministic parameter init (uniform, Linear-like scale)
    w1 = jax.random.uniform(k1, (d_model, d_ff), jnp.float32, -0.1, 0.1)
    b1 = jax.random.uniform(k2, (1, d_ff), jnp.float32, -0.1, 0.1)
    w2 = jax.random.uniform(k3, (d_ff, d_model), jnp.float32, -0.1, 0.1)
    b2 = jax.random.uniform(k4, (1, d_model), jnp.float32, -0.1, 0.1)
    gamma = jnp.ones((1, d_model), jnp.float32)
    beta = jnp.zeros((1, d_model), jnp.float32)

    # TODO(synk): dropout omitted (inference / p=0 behaviour); identity here.
    out = positionwise_ffnn(x, w1, b1, w2, b2, gamma, beta)
    jax.block_until_ready(out)

    ref = _reference(x, w1, b1, w2, b2, gamma, beta)
    assert out.shape == (B, S, d_model)
    assert jnp.allclose(out, ref, atol=1e-4, rtol=1e-4), \
        float(jnp.max(jnp.abs(out - ref)))

    print("KERNEL_OK")
</pallas_src>

<mosaic_0001>
module attributes {stable_mosaic.version = 11 : i64} {
  func.func @_ffnn_kernel(%arg0: i32, %arg1: i32, %arg2: memref<16x128xf32, #tpu.memory_space<vmem>>, %arg3: memref<128x128xf32, #tpu.memory_space<vmem>>, %arg4: memref<1x128xf32, #tpu.memory_space<vmem>>, %arg5: memref<128x128xf32, #tpu.memory_space<vmem>>, %arg6: memref<1x128xf32, #tpu.memory_space<vmem>>, %arg7: memref<1x128xf32, #tpu.memory_space<vmem>>, %arg8: memref<1x128xf32, #tpu.memory_space<vmem>>, %arg9: memref<16x128xf32, #tpu.memory_space<vmem>>, %arg10: memref<16x128xf32, #tpu.memory_space<vmem>>) attributes {dimension_semantics = [#tpu.dimension_semantics<parallel>, #tpu.dimension_semantics<arbitrary>], iteration_bounds = array<i64: 1, 1>, scalar_prefetch = 0 : i64, scratch_operands = 1 : i64, tpu.core_type = #tpu.core_type<tc>, window_params = [{transform_indices = @transform_0, window_bounds = array<i64: 16, 128>}, {transform_indices = @transform_1, window_bounds = array<i64: 128, 128>}, {transform_indices = @transform_2, window_bounds = array<i64: 1, 128>}, {transform_indices = @transform_3, window_bounds = array<i64: 128, 128>}, {pipeline_mode = #tpu.pipeline_mode<synchronous>, transform_indices = @transform_4, window_bounds = array<i64: 1, 128>}, {pipeline_mode = #tpu.pipeline_mode<synchronous>, transform_indices = @transform_5, window_bounds = array<i64: 1, 128>}, {pipeline_mode = #tpu.pipeline_mode<synchronous>, transform_indices = @transform_6, window_bounds = array<i64: 1, 128>}, {transform_indices = @transform_7, window_bounds = array<i64: 16, 128>}]} {
    %c0_i32 = arith.constant 0 : i32
    %0 = arith.cmpi eq, %arg1, %c0_i32 : i32
    %1 = arith.extui %0 : i1 to i32
    %c0_i32_0 = arith.constant 0 : i32
    %2 = arith.cmpi ne, %1, %c0_i32_0 : i32
    scf.if %2 {
      %cst_16 = arith.constant 0.000000e+00 : f32
      %19 = vector.broadcast %cst_16 : f32 to vector<16x128xf32>
      %c0_17 = arith.constant 0 : index
      %c0_18 = arith.constant 0 : index
      %20 = vector.load %arg10[%c0_17, %c0_18] : memref<16x128xf32, #tpu.memory_space<vmem>>, vector<16x128xf32>
      tpu.vector_store %arg10[%c0_17, %c0_18], %19 {strides = array<i32>} : memref<16x128xf32, #tpu.memory_space<vmem>>, vector<16x128xf32>,
    } else {
    }
    %c0 = arith.constant 0 : index
    %c0_1 = arith.constant 0 : index
    %3 = vector.load %arg2[%c0, %c0_1] : memref<16x128xf32, #tpu.memory_space<vmem>>, vector<16x128xf32>
    %c0_2 = arith.constant 0 : index
    %c0_3 = arith.constant 0 : index
    %4 = vector.load %arg3[%c0_2, %c0_3] : memref<128x128xf32, #tpu.memory_space<vmem>>, vector<128x128xf32>
    %cst = arith.constant dense<0.000000e+00> : vector<16x128xf32>
    %5 = tpu.matmul %3, %4, %cst {dimension_numbers = #tpu.dot_dimension_numbers<[1], [0], [0], [1], [0, 0, 1, 1], [], []>} : vector<16x128xf32>, vector<128x128xf32>, vector<16x128xf32> -> vector<16x128xf32>
    %c0_4 = arith.constant 0 : index
    %c0_5 = arith.constant 0 : index
    %6 = vector.load %arg4[%c0_4, %c0_5] : memref<1x128xf32, #tpu.memory_space<vmem>>, vector<1x128xf32>
    %7 = vector.broadcast %6 : vector<1x128xf32> to vector<16x128xf32>
    %8 = arith.addf %5, %7 : vector<16x128xf32>
    %cst_6 = arith.constant 0.000000e+00 : f32
    %9 = vector.broadcast %cst_6 : f32 to vector<16x128xf32>
    %10 = arith.maximumf %8, %9 : vector<16x128xf32>
    %c0_7 = arith.constant 0 : index
    %c0_8 = arith.constant 0 : index
    %11 = vector.load %arg10[%c0_7, %c0_8] : memref<16x128xf32, #tpu.memory_space<vmem>>, vector<16x128xf32>
    %c0_9 = arith.constant 0 : index
    %c0_10 = arith.constant 0 : index
    %12 = vector.load %arg5[%c0_9, %c0_10] : memref<128x128xf32, #tpu.memory_space<vmem>>, vector<128x128xf32>
    %cst_11 = arith.constant dense<0.000000e+00> : vector<16x128xf32>
    %13 = tpu.matmul %10, %12, %cst_11 {dimension_numbers = #tpu.dot_dimension_numbers<[1], [0], [0], [1], [0, 0, 1, 1], [], []>} : vector<16x128xf32>, vector<128x128xf32>, vector<16x128xf32> -> vector<16x128xf32>
    %14 = arith.addf %11, %13 : vector<16x128xf32>
    %c0_12 = arith.constant 0 : index
    %c0_13 = arith.constant 0 : index
    %15 = vector.load %arg10[%c0_12, %c0_13] : memref<16x128xf32, #tpu.memory_space<vmem>>, vector<16x128xf32>
    tpu.vector_store %arg10[%c0_12, %c0_13], %14 {strides = array<i32>} : memref<16x128xf32, #tpu.memory_space<vmem>>, vector<16x128xf32>,
    %c0_i32_14 = arith.constant 0 : i32
    %16 = arith.cmpi eq, %arg1, %c0_i32_14 : i32
    %17 = arith.extui %16 : i1 to i32
    %c0_i32_15 = arith.constant 0 : i32
    %18 = arith.cmpi ne, %17, %c0_i32_15 : i32
    scf.if %18 {
      %c0_16 = arith.constant 0 : index
      %c0_17 = arith.constant 0 : index
      %19 = vector.load %arg2[%c0_16, %c0_17] : memref<16x128xf32, #tpu.memory_space<vmem>>, vector<16x128xf32>
      %c0_18 = arith.constant 0 : index
      %c0_19 = arith.constant 0 : index
      %20 = vector.load %arg10[%c0_18, %c0_19] : memref<16x128xf32, #tpu.memory_space<vmem>>, vector<16x128xf32>
      %c0_20 = arith.constant 0 : index
      %c0_21 = arith.constant 0 : index
      %21 = vector.load %arg6[%c0_20, %c0_21] : memref<1x128xf32, #tpu.memory_space<vmem>>, vector<1x128xf32>
      %22 = vector.broadcast %21 : vector<1x128xf32> to vector<16x128xf32>
      %23 = arith.addf %20, %22 : vector<16x128xf32>
      %24 = arith.addf %23, %19 : vector<16x128xf32>
      %cst_22 = arith.constant dense<0.000000e+00> : vector<16xf32>
      %25 = vector.multi_reduction <add>, %24, %cst_22 [1] : vector<16x128xf32> to vector<16xf32>
      %26 = vector.shape_cast %25 : vector<16xf32> to vector<16x1xf32>
      %cst_23 = arith.constant 3.125000e-02 : f32
      %27 = vector.broadcast %cst_23 : f32 to vector<16x1xf32>
      %28 = arith.mulf %26, %27 : vector<16x1xf32>
      %29 = vector.broadcast %28 : vector<16x1xf32> to vector<16x128xf32>
      %30 = arith.subf %24, %29 : vector<16x128xf32>
      %31 = tpu.iota {dimensions = array<i32: 1>} : vector<16x128xi32>
      %c32_i32 = arith.constant 32 : i32
      %32 = vector.broadcast %c32_i32 : i32 to vector<16x128xi32>
      %33 = arith.cmpi slt, %31, %32 : vector<16x128xi32>
      %cst_24 = arith.constant 0.000000e+00 : f32
      %34 = vector.broadcast %cst_24 : f32 to vector<16x128xf32>
      %35 = arith.select %33, %30, %34 : vector<16x128xi1>, vector<16x128xf32>
      %36 = arith.mulf %35, %35 : vector<16x128xf32>
      %cst_25 = arith.constant dense<0.000000e+00> : vector<16xf32>
      %37 = vector.multi_reduction <add>, %36, %cst_25 [1] : vector<16x128xf32> to vector<16xf32>
      %38 = vector.shape_cast %37 : vector<16xf32> to vector<16x1xf32>
      %cst_26 = arith.constant 3.125000e-02 : f32
      %39 = vector.broadcast %cst_26 : f32 to vector<16x1xf32>
      %40 = arith.mulf %38, %39 : vector<16x1xf32>
      %cst_27 = arith.constant 9.99999997E-7 : f32
      %41 = vector.broadcast %cst_27 : f32 to vector<16x1xf32>
      %42 = arith.addf %40, %41 : vector<16x1xf32>
      %43 = math.rsqrt %42 : vector<16x1xf32>
      %44 = vector.broadcast %28 : vector<16x1xf32> to vector<16x128xf32>
      %45 = arith.subf %24, %44 : vector<16x128xf32>
      %46 = vector.broadcast %43 : vector<16x1xf32> to vector<16x128xf32>
      %47 = arith.mulf %45, %46 : vector<16x128xf32>
      %c0_28 = arith.constant 0 : index
      %c0_29 = arith.constant 0 : index
      %48 = vector.load %arg7[%c0_28, %c0_29] : memref<1x128xf32, #tpu.memory_space<vmem>>, vector<1x128xf32>
      %49 = vector.broadcast %48 : vector<1x128xf32> to vector<16x128xf32>
      %50 = arith.mulf %47, %49 : vector<16x128xf32>
      %c0_30 = arith.constant 0 : index
      %c0_31 = arith.constant 0 : index
      %51 = vector.load %arg8[%c0_30, %c0_31] : memref<1x128xf32, #tpu.memory_space<vmem>>, vector<1x128xf32>
      %52 = vector.broadcast %51 : vector<1x128xf32> to vector<16x128xf32>
      %53 = arith.addf %50, %52 : vector<16x128xf32>
      %c0_32 = arith.constant 0 : index
      %c0_33 = arith.constant 0 : index
      %54 = vector.load %arg9[%c0_32, %c0_33] : memref<16x128xf32, #tpu.memory_space<vmem>>, vector<16x128xf32>
      tpu.vector_store %arg9[%c0_32, %c0_33], %53 {strides = array<i32>} : memref<16x128xf32, #tpu.memory_space<vmem>>, vector<16x128xf32>,
    } else {
    }
    return
  }
  func.func @transform_0(%arg0: i32, %arg1: i32) -> (i32, i32) {
    %c0_i32 = arith.constant 0 : i32
    %c0_i32_0 = arith.constant 0 : i32
    return %arg0, %c0_i32 : i32, i32
  }
  func.func @transform_1(%arg0: i32, %arg1: i32) -> (i32, i32) {
    %c0_i32 = arith.constant 0 : i32
    %c0_i32_0 = arith.constant 0 : i32
    return %c0_i32, %arg1 : i32, i32
  }
  func.func @transform_2(%arg0: i32, %arg1: i32) -> (i32, i32) {
    %c0_i32 = arith.constant 0 : i32
    %c0_i32_0 = arith.constant 0 : i32
    return %c0_i32, %arg1 : i32, i32
  }
  func.func @transform_3(%arg0: i32, %arg1: i32) -> (i32, i32) {
    %c0_i32 = arith.constant 0 : i32
    %c0_i32_0 = arith.constant 0 : i32
    return %arg1, %c0_i32 : i32, i32
  }
  func.func @transform_4(%arg0: i32, %arg1: i32) -> (i32, i32) {
    %c0_i32 = arith.constant 0 : i32
    %c0_i32_0 = arith.constant 0 : i32
    %c0_i32_1 = arith.constant 0 : i32
    return %c0_i32, %c0_i32_0 : i32, i32
  }
  func.func @transform_5(%arg0: i32, %arg1: i32) -> (i32, i32) {
    %c0_i32 = arith.constant 0 : i32
    %c0_i32_0 = arith.constant 0 : i32
    %c0_i32_1 = arith.constant 0 : i32
    return %c0_i32, %c0_i32_0 : i32, i32
  }
  func.func @transform_6(%arg0: i32, %arg1: i32) -> (i32, i32) {
    %c0_i32 = arith.constant 0 : i32
    %c0_i32_0 = arith.constant 0 : i32
    %c0_i32_1 = arith.constant 0 : i32
    return %c0_i32, %c0_i32_0 : i32, i32
  }
  func.func @transform_7(%arg0: i32, %arg1: i32) -> (i32, i32) {
    %c0_i32 = arith.constant 0 : i32
    %c0_i32_0 = arith.constant 0 : i32
    return %arg0, %c0_i32 : i32, i32
  }
}

</mosaic_0001>

<llo_original>
// kernel: tpu_custom_call.1
$region0: #{tpu_custom_call.1}
  #allocation0 [shape = 'u32[]', space=smem, size = 0x4, offset = 0x4, fixed_abs, tag = 'smem constant byte address 0x4 - core index']
  #allocation1 [shape = 'u32[72,128]{1,0:T(1,128)}', space=vmem, size = 0x9000, scoped, tag = 'internal scratch']
  #allocation2 [shape = 'f32[16,128]{1,0:T(8,128)}', space=vmem, size = 0x2000, scoped, tag = 'scratch operand']
  %s0 = inlined_call_operand.hbm [shape: f32[16,128], index: 0, kind: input, shape index: {}]
  %s1 = inlined_call_operand.hbm [shape: f32[128,128], index: 1, kind: input, shape index: {}]
  %s2 = inlined_call_operand.vmem [shape: f32[1,128], index: 2, kind: input, shape index: {}]
  %s3 = inlined_call_operand.hbm [shape: f32[128,128], index: 3, kind: input, shape index: {}]
  %s4 = inlined_call_operand.vmem [shape: f32[1,128], index: 4, kind: input, shape index: {}]
  %s5 = inlined_call_operand.vmem [shape: f32[1,128], index: 5, kind: input, shape index: {}]
  %s6 = inlined_call_operand.vmem [shape: f32[1,128], index: 6, kind: input, shape index: {}]
  %s7 = inlined_call_operand.hbm [shape: f32[16,128], index: 7, kind: output, shape index: {}]
  %s8 = sld [smem:[#allocation0]]
  $region58: #{tpu_custom_call.1} parent=0
    _
  %s10 = ssub.s32 1, %s8
  %s11 = scalar_select 0, %s10, %s8
  $region1: #{tpu_custom_call.1} parent=0
    #allocation3 [shape = 'u8[8192]{0}', space=vmem, size = 0x2000, scoped, tag = 'input window, operand 0, single buffered']
    #allocation4 [shape = 's32[1]{0}', space=sflag, size = 0x4, scoped, tag = 'scoped memory for tpu_custom_call.1']
    #allocation5 [shape = 's32[1]{0}', space=sflag, size = 0x4, scoped, tag = 'scoped memory for tpu_custom_call.1']
    #allocation6 [shape = 'u8[65536]{0}', space=vmem, size = 0x10000, scoped, tag = 'input window, operand 1, single buffered']
    #allocation7 [shape = 's32[1]{0}', space=sflag, size = 0x4, scoped, tag = 'scoped memory for tpu_custom_call.1']
    #allocation8 [shape = 'u8[65536]{0}', space=vmem, size = 0x10000, scoped, tag = 'input window, operand 3, single buffered']
    #allocation9 [shape = 'u8[8192]{0}', space=vmem, size = 0x2000, scoped, tag = 'output window, operand 0, single buffered']
    %12 = vsyncpa [#allocation4], 0
    %13 = vsyncpa [#allocation7], 0
    %14 = vsyncpa [#allocation5], 0
    // Predicated region
    $region2: #{tpu_custom_call.1} parent=1 // pred_check
      _
    $region3: #{tpu_custom_call.1} parent=1 // pred_check_branch
      %16 = sbr.rel (0) target = $region5
    $region4: #{tpu_custom_call.1} parent=1 // pred_region
      %18 = vsyncadd [#allocation4], 0
      %s19 = sshll.u32 %s0, 4
      %s20 = int_to_ptr.hbm [resolvable:$true] %s19
      %s21 = sshll.u32 [#allocation3], 4
      %s22 = int_to_ptr.vmem [resolvable:$true] %s21
      %27 = dma.hbm_to_vmem [thread:$0]  %s20, 256, %s22, [#allocation4], 128, 128, 8
    $region5: #{tpu_custom_call.1} parent=1 // pred_fallthru
      _
    // Predicated region
    $region6: #{tpu_custom_call.1} parent=1 // pred_check
      _
    $region7: #{tpu_custom_call.1} parent=1 // pred_check_branch
      %29 = sbr.rel (0) target = $region9
    $region8: #{tpu_custom_call.1} parent=1 // pred_region
      %31 = vsyncadd [#allocation7], 0
      %s32 = sshll.u32 %s1, 4
      %s33 = int_to_ptr.hbm [resolvable:$true] %s32
      %s34 = sshll.u32 [#allocation6], 4
      %s35 = int_to_ptr.vmem [resolvable:$true] %s34
      %40 = dma.hbm_to_vmem [thread:$0]  %s33, 2048, %s35, [#allocation7], 128, 128, 8
    $region9: #{tpu_custom_call.1} parent=1 // pred_fallthru
      _
    // Predicated region
    $region10: #{tpu_custom_call.1} parent=1 // pred_check
      _
    $region11: #{tpu_custom_call.1} parent=1 // pred_check_branch
      %42 = sbr.rel (0) target = $region13
    $region12: #{tpu_custom_call.1} parent=1 // pred_region
      _
    $region13: #{tpu_custom_call.1} parent=1 // pred_fallthru
      _
    // Predicated region
    $region14: #{tpu_custom_call.1} parent=1 // pred_check
      _
    $region15: #{tpu_custom_call.1} parent=1 // pred_check_branch
      %44 = sbr.rel (0) target = $region17
    $region16: #{tpu_custom_call.1} parent=1 // pred_region
      %46 = vsyncadd [#allocation7], 0
      %s47 = sshll.u32 %s3, 4
      %s48 = int_to_ptr.hbm [resolvable:$true] %s47
      %s49 = sshll.u32 [#allocation8], 4
      %s50 = int_to_ptr.vmem [resolvable:$true] %s49
      %55 = dma.hbm_to_vmem [thread:$0]  %s48, 2048, %s50, [#allocation7], 128, 128, 8
    $region17: #{tpu_custom_call.1} parent=1 // pred_fallthru
      _
    // Predicated region
    $region18: #{tpu_custom_call.1} parent=1 // pred_check
      _
    $region19: #{tpu_custom_call.1} parent=1 // pred_check_branch
      %57 = sbr.rel (0) target = $region21
    $region20: #{tpu_custom_call.1} parent=1 // pred_region
      _
    $region21: #{tpu_custom_call.1} parent=1 // pred_fallthru
      _
    // Predicated region
    $region22: #{tpu_custom_call.1} parent=1 // pred_check
      _
    $region23: #{tpu_custom_call.1} parent=1 // pred_check_branch
      %59 = sbr.rel (0) target = $region25
    $region24: #{tpu_custom_call.1} parent=1 // pred_region
      _
    $region25: #{tpu_custom_call.1} parent=1 // pred_fallthru
      _
    // Predicated region
    $region26: #{tpu_custom_call.1} parent=1 // pred_check
      _
    $region27: #{tpu_custom_call.1} parent=1 // pred_check_branch
      %61 = sbr.rel (0) target = $region29
    $region28: #{tpu_custom_call.1} parent=1 // pred_region
      _
    $region29: #{tpu_custom_call.1} parent=1 // pred_fallthru
      _
    // Predicated region
    $region30: #{tpu_custom_call.1} parent=1 // pred_check
      _
    $region31: #{tpu_custom_call.1} parent=1 // pred_check_branch
      %63 = sbr.rel (0) target = $region33
    $region32: #{tpu_custom_call.1} parent=1 // pred_region
      %65 = dma.done [#allocation4], 256
    $region33: #{tpu_custom_call.1} parent=1 // pred_fallthru
      _
    // Predicated region
    $region34: #{tpu_custom_call.1} parent=1 // pred_check
      _
    $region35: #{tpu_custom_call.1} parent=1 // pred_check_branch
      %67 = sbr.rel (0) target = $region37
    $region36: #{tpu_custom_call.1} parent=1 // pred_region
      %69 = dma.done [#allocation7], 2048
    $region37: #{tpu_custom_call.1} parent=1 // pred_fallthru
      _
    // Predicated region
    $region38: #{tpu_custom_call.1} parent=1 // pred_check
      _
    $region39: #{tpu_custom_call.1} parent=1 // pred_check_branch
      %71 = sbr.rel (0) target = $region41
    $region40: #{tpu_custom_call.1} parent=1 // pred_region
      %73 = dma.done [#allocation7], 2048
    $region41: #{tpu_custom_call.1} parent=1 // pred_fallthru
      _
    %p74 = scmp.eq.s32.totalorder 0, 0
    // Predicated region
    $region42: #{tpu_custom_call.1} parent=1 // pred_check
      %p75 = pneg %p74
    $region43: #{tpu_custom_call.1} parent=1 // pred_check_branch
      %77 = sbr.rel (%p75) target = $region45
    $region44: #{tpu_custom_call.1} parent=1 // pred_region
      %78 = vst [vmem:[#allocation2] sm:$0xff] 0.0
      %79 = vst [vmem:[#allocation2 + $0x8] sm:$0xff] 0.0
    $region45: #{tpu_custom_call.1} parent=1 // pred_fallthru
      _
    %v80 = vld [vmem:[#allocation3] sm:$0xff]
    %v81 = vld [vmem:[#allocation3 + $0x8] sm:$0xff]
    %v82 = vld [vmem:[#allocation6] sm:$0xff]
    %v83 = vld [vmem:[#allocation6 + $0x8] sm:$0xff]
    %v84 = vld [vmem:[#allocation6 + $0x10] sm:$0xff]
    %v85 = vld [vmem:[#allocation6 + $0x18] sm:$0xff]
    %v86 = vld [vmem:[#allocation6 + $0x20] sm:$0xff]
    %v87 = vld [vmem:[#allocation6 + $0x28] sm:$0xff]
    %v88 = vld [vmem:[#allocation6 + $0x30] sm:$0xff]
    %v89 = vld [vmem:[#allocation6 + $0x38] sm:$0xff]
    %v90 = vld [vmem:[#allocation6 + $0x40] sm:$0xff]
    %v91 = vld [vmem:[#allocation6 + $0x48] sm:$0xff]
    %v92 = vld [vmem:[#allocation6 + $0x50] sm:$0xff]
    %v93 = vld [vmem:[#allocation6 + $0x58] sm:$0xff]
    %v94 = vld [vmem:[#allocation6 + $0x60] sm:$0xff]
    %v95 = vld [vmem:[#allocation6 + $0x68] sm:$0xff]
    %v96 = vld [vmem:[#allocation6 + $0x70] sm:$0xff]
    %v97 = vld [vmem:[#allocation6 + $0x78] sm:$0xff]
    %v98 = vld [vmem:[%s2] sm:$0x1]
    %v100 = vperm.slane %v98, 0
    %102 = vmatpush.msra.mxu0 %v97
    %103 = vmatpush.msra.mxu0 %v96
    %104 = vmatpush.msra.mxu0 %v95
    %105 = vmatpush.msra.mxu0 %v94
    %106 = vmatpush.msra.mxu0 %v93
    %107 = vmatpush.msra.mxu0 %v92
    %108 = vmatpush.msra.mxu0 %v91
    %109 = vmatpush.msra.mxu0 %v90
    %110 = vmatpush.msra.mxu0 %v89
    %111 = vmatpush.msra.mxu0 %v88
    %112 = vmatpush.msra.mxu0 %v87
    %113 = vmatpush.msra.mxu0 %v86
    %114 = vmatpush.msra.mxu0 %v85
    %115 = vmatpush.msra.mxu0 %v84
    %116 = vmatpush.msra.mxu0 %v83
    %117 = vmatpush.msra.mxu0 %v82
    %118 = vmatmul.f32.gmra.mxu0 %v80
    %v119 = vpop.f32.mrf.mxu0
    %v120 = vadd.f32 %v100, %v119
    %121 = vmatmul.f32.gmra.mxu0 %v81
    %v122 = vpop.f32.mrf.mxu0
    %v123 = vadd.f32 %v100, %v122
    %124 = vdwg.mxu0
    %v125 = vmax.f32 %v120, 0.0
    %v126 = vmax.f32 %v123, 0.0
    %v127 = vld [vmem:[#allocation2] sm:$0xff]
    %v128 = vld [vmem:[#allocation2 + $0x8] sm:$0xff]
    %v129 = vld [vmem:[#allocation8] sm:$0xff]
    %v130 = vld [vmem:[#allocation8 + $0x8] sm:$0xff]
    %v131 = vld [vmem:[#allocation8 + $0x10] sm:$0xff]
    %v132 = vld [vmem:[#allocation8 + $0x18] sm:$0xff]
    %v133 = vld [vmem:[#allocation8 + $0x20] sm:$0xff]
    %v134 = vld [vmem:[#allocation8 + $0x28] sm:$0xff]
    %v135 = vld [vmem:[#allocation8 + $0x30] sm:$0xff]
    %v136 = vld [vmem:[#allocation8 + $0x38] sm:$0xff]
    %v137 = vld [vmem:[#allocation8 + $0x40] sm:$0xff]
    %v138 = vld [vmem:[#allocation8 + $0x48] sm:$0xff]
    %v139 = vld [vmem:[#allocation8 + $0x50] sm:$0xff]
    %v140 = vld [vmem:[#allocation8 + $0x58] sm:$0xff]
    %v141 = vld [vmem:[#allocation8 + $0x60] sm:$0xff]
    %v142 = vld [vmem:[#allocation8 + $0x68] sm:$0xff]
    %v143 = vld [vmem:[#allocation8 + $0x70] sm:$0xff]
    %v144 = vld [vmem:[#allocation8 + $0x78] sm:$0xff]
    %145 = vmatpush.msra.mxu0 %v144
    %146 = vmatpush.msra.mxu0 %v143
    %147 = vmatpush.msra.mxu0 %v142
    %148 = vmatpush.msra.mxu0 %v141
    %149 = vmatpush.msra.mxu0 %v140
    %150 = vmatpush.msra.mxu0 %v139
    %151 = vmatpush.msra.mxu0 %v138
    %152 = vmatpush.msra.mxu0 %v137
    %153 = vmatpush.msra.mxu0 %v136
    %154 = vmatpush.msra.mxu0 %v135
    %155 = vmatpush.msra.mxu0 %v134
    %156 = vmatpush.msra.mxu0 %v133
    %157 = vmatpush.msra.mxu0 %v132
    %158 = vmatpush.msra.mxu0 %v131
    %159 = vmatpush.msra.mxu0 %v130
    %160 = vmatpush.msra.mxu0 %v129
    %161 = vmatmul.f32.gmra.mxu0 %v125
    %v162 = vpop.f32.mrf.mxu0
    %v163 = vadd.f32 0.0, %v162
    %164 = vmatmul.f32.gmra.mxu0 %v126
    %v165 = vpop.f32.mrf.mxu0
    %v166 = vadd.f32 0.0, %v165
    %167 = vdwg.mxu0
    %v168 = vadd.f32 %v127, %v163
    %v169 = vadd.f32 %v128, %v166
    %170 = vst [vmem:[#allocation2] sm:$0xff] %v168
    %171 = vst [vmem:[#allocation2 + $0x8] sm:$0xff] %v169
    // Predicated region
    $region46: #{tpu_custom_call.1} parent=1 // pred_check
      %p172 = pneg %p74
    $region47: #{tpu_custom_call.1} parent=1 // pred_check_branch
      %174 = sbr.rel (%p172) target = $region49
    $region48: #{tpu_custom_call.1} parent=1 // pred_region
      %v175 = vld [vmem:[#allocation3] sm:$0xff]
      %v176 = vld [vmem:[#allocation3 + $0x8] sm:$0xff]
      %v177 = vld [vmem:[#allocation2] sm:$0xff]
      %v178 = vld [vmem:[#allocation2 + $0x8] sm:$0xff]
      %v179 = vld [vmem:[%s4] sm:$0x1]
      %v181 = vperm.slane %v179, 0
      %v183 = vadd.f32 %v177, %v181
      %v184 = vadd.f32 %v178, %v181
      %v185 = vadd.f32 %v183, %v175
      %v186 = vadd.f32 %v184, %v176
      %187 = vadd.xlane.f32.xlu0 %v185
      %v188 = vpop.xlane.xlu0 %187
      %189 = vadd.xlane.f32.xlu0 %v186
      %v190 = vpop.xlane.xlu0 %189
      %v191 = vmul.f32 %v188, 0.03125
      %v192 = vmul.f32 %v190, 0.03125
      %v193 = vsub.f32 %v185, %v191
      %v194 = vsub.f32 %v186, %v192
      %v195 = vlaneseq
      %v196 = vand.u32 %v195, 127
      %vm197 = vcmp.lt.s32.totalorder %v196, 32
      %v198 = vsel %vm197, %v193, 0.0
      %v199 = vsel %vm197, %v194, 0.0
      %v200 = vmul.f32 %v198, %v198
      %v201 = vmul.f32 %v199, %v199
      %202 = vadd.xlane.f32.xlu0 %v200
      %v203 = vpop.xlane.xlu0 %202
      %204 = vadd.xlane.f32.xlu0 %v201
      %v205 = vpop.xlane.xlu0 %204
      %v206 = vmul.f32 %v203, 0.03125
      %v207 = vmul.f32 %v205, 0.03125
      %v208 = vadd.f32 %v206, 1e-06
      %v209 = vadd.f32 %v207, 1e-06
      %v210 = vrsqrt.pop %v208
      %v211 = vmul.f32 %v210, %v208
      %v212 = vmul.f32 %v211, %v210
      %v213 = vmul.f32 0.5, %v212
      %v214 = vsub.f32 1.5, %v213
      %v215 = vmul.f32 %v210, %v214
      %vm216 = vweird.f32 %v208
      %vm217 = vweird.f32 %v210
      %vm218 = vmor %vm216, %vm217
      %v219 = vsel %vm218, %v210, %v215
      %v220 = vrsqrt.pop %v209
      %v221 = vmul.f32 %v220, %v209
      %v222 = vmul.f32 %v221, %v220
      %v223 = vmul.f32 0.5, %v222
      %v224 = vsub.f32 1.5, %v223
      %v225 = vmul.f32 %v220, %v224
      %vm226 = vweird.f32 %v209
      %vm227 = vweird.f32 %v220
      %vm228 = vmor %vm226, %vm227
      %v229 = vsel %vm228, %v220, %v225
      %v230 = vmul.f32 %v193, %v219
      %v231 = vmul.f32 %v194, %v229
      %v232 = vld [vmem:[%s5] sm:$0x1]
      %v234 = vperm.slane %v232, 0
      %v236 = vmul.f32 %v230, %v234
      %v237 = vmul.f32 %v231, %v234
      %v238 = vld [vmem:[%s6] sm:$0x1]
      %v240 = vperm.slane %v238, 0
      %v242 = vadd.f32 %v236, %v240
      %v243 = vadd.f32 %v237, %v240
      %244 = vst [vmem:[#allocation9] sm:$0xff] %v242
      %245 = vst [vmem:[#allocation9 + $0x8] sm:$0xff] %v243
    $region49: #{tpu_custom_call.1} parent=1 // pred_fallthru
      _
    // Predicated region
    $region50: #{tpu_custom_call.1} parent=1 // pred_check
      _
    $region51: #{tpu_custom_call.1} parent=1 // pred_check_branch
      %247 = sbr.rel (0) target = $region53
    $region52: #{tpu_custom_call.1} parent=1 // pred_region
      %249 = vsyncadd [#allocation5], 0
      %s250 = sshll.u32 [#allocation9], 4
      %s251 = int_to_ptr.vmem [resolvable:$true] %s250
      %s252 = sshll.u32 %s7, 4
      %s253 = int_to_ptr.hbm [resolvable:$true] %s252
      %258 = dma.vmem_to_hbm [thread:$0]  %s251, 256, %s253, [#allocation5], 128, 128, 8
    $region53: #{tpu_custom_call.1} parent=1 // pred_fallthru
      _
    // Predicated region
    $region54: #{tpu_custom_call.1} parent=1 // pred_check
      _
    $region55: #{tpu_custom_call.1} parent=1 // pred_check_branch
      %260 = sbr.rel (0) target = $region57
    $region56: #{tpu_custom_call.1} parent=1 // pred_region
      %262 = dma.done [#allocation5], 256
    $region57: #{tpu_custom_call.1} parent=1 // pred_fallthru
      _
    %263 = vsyncpa [#allocation4], 1
    %264 = vsyncpa [#allocation7], 1
    %265 = vsyncpa [#allocation5], 1

</llo_original>
